<compile_context>
chip_gen: v6e
topology: v6e:2x2x1
jax: 0.10.0
libtpu: 0.0.40
codegen_flags: <defaults>
</compile_context>

<pallas_src>
import math

import jax
import jax.numpy as jnp
from jax.experimental import pallas as pl
from jax.experimental.pallas import tpu as pltpu


def _dgc_kernel(x_ref, adj_ref, w_ref, out_ref):
    f_out = out_ref.shape[-1]
    x = x_ref[...]                                # [Bt, N, F_in]
    # Sums / normalization in f32 regardless of input dtype (correctness feedback).
    adj = adj_ref[...].astype(jnp.float32)        # [Bt, N, N]
    w = w_ref[...]                                # [F_in, 2*F_out]  == [W1 | W2]

    bt, n, f_in = x.shape

    # Fused feature transform for both branches: one big MXU matmul over Bt*N rows.
    xw = jnp.dot(x.reshape(bt * n, f_in), w,
                 preferred_element_type=jnp.float32)          # [Bt*N, 2*F_out]
    xw = xw.reshape(bt, n, w.shape[1])
    xw1 = xw[..., :f_out]                                     # [Bt, N, F_out]
    xw2 = xw[..., f_out:]                                     # [Bt, N, F_out]

    # ---- Branch 1: norm_adj @ xw1, done as (adj @ xw1) scaled by 1/rowsum ----
    s1 = jnp.einsum('bij,bjk->bik', adj, xw1,
                    preferred_element_type=jnp.float32)       # [Bt, N, F_out]
    inv_row = 1.0 / jnp.sum(adj, axis=2, keepdims=True)       # [Bt, N, 1]
    out1 = jnp.maximum(s1 * inv_row, 0.0)

    # ---- Branch 2: normalize adj's columns (== rows of adj^T), then trans-LHS matmul ----
    inv_col = 1.0 / jnp.sum(adj, axis=1, keepdims=True)       # [Bt, 1, N]
    adj_cn = adj * inv_col                                    # lane-aligned broadcast
    s2 = jnp.einsum('bji,bjk->bik', adj_cn, xw2,
                    preferred_element_type=jnp.float32)       # == inv_norm_adj @ xw2
    out2 = jnp.maximum(s2, 0.0)

    out_ref[...] = ((out1 + out2) * 0.5).astype(out_ref.dtype)


def _choose_block_batch(B, N, F_in, F_out, vmem_budget_bytes=8 << 20):
    """How many graphs per grid step.

    Targets ~512 matmul rows per step (amortizes ~0.35us/step overhead, fills MXU
    sublanes), keeps >=2 grid steps when B >= 2 (so the 'parallel' batch axis can be
    sharded across v7x's two TensorCores), and keeps the double-buffered working set
    well under the scoped-VMEM default (conservative for v7x's 64 MiB VMEM).
    """
    target_rows = 512
    best = 1
    for bt in range(1, B + 1):
        if B % bt:
            continue
        if B >= 2 and (B // bt) < 2:
            continue
        per_step = 4 * bt * (N * F_in + N * N + N * F_out) * 2   # f32, double-buffered
        if per_step > vmem_budget_bytes:
            continue
        best = bt
        if bt * N >= target_rows:
            break
    return best


def directed_graph_convolution(inputs, adj, weight1, weight2, *, block_batch=None):
    """inputs: [B, N, F_in], adj: [B, N, N] -> [B, N, F_out]."""
    B, N, F_in = inputs.shape
    F_out = weight1.shape[1]
    adj = adj.astype(inputs.dtype)                       # matches torch adj.to(inputs.dtype)
    w_cat = jnp.concatenate([weight1, weight2], axis=1)  # [F_in, 2*F_out]

    Bt = _choose_block_batch(B, N, F_in, F_out) if block_batch is None else block_batch
    assert B % Bt == 0, "block_batch must divide the batch size"

    return pl.pallas_call(
        _dgc_kernel,
        out_shape=jax.ShapeDtypeStruct((B, N, F_out), inputs.dtype),
        grid_spec=pltpu.PrefetchScalarGridSpec(
            num_scalar_prefetch=0,
            grid=(B // Bt,),
            in_specs=[
                pl.BlockSpec((Bt, N, F_in), lambda b: (b, 0, 0)),
                pl.BlockSpec((Bt, N, N), lambda b: (b, 0, 0)),
                # Constant block across the grid; small enough that an extra pipeline
                # buffer is irrelevant here (use pipeline_mode=pl.Buffered(1) if it grows).
                pl.BlockSpec((F_in, 2 * F_out), lambda b: (0, 0)),
            ],
            out_specs=pl.BlockSpec((Bt, N, F_out), lambda b: (b, 0, 0)),
        ),
        compiler_params=pltpu.CompilerParams(
            dimension_semantics=("parallel",)),
    )(inputs, adj, w_cat)


def xavier_uniform(key, fan_in, fan_out, dtype=jnp.float32):
    bound = math.sqrt(6.0 / (fan_in + fan_out))
    return jax.random.uniform(key, (fan_in, fan_out), dtype=dtype,
                              minval=-bound, maxval=bound)


def reference(inputs, adj, w1, w2):
    adj = adj.astype(inputs.dtype)
    norm_adj = adj / jnp.sum(adj, axis=2, keepdims=True)
    o1 = jax.nn.relu(jnp.matmul(norm_adj, jnp.matmul(inputs, w1)))
    adj_t = jnp.swapaxes(adj, 1, 2)
    inv_norm_adj = adj_t / jnp.sum(adj_t, axis=2, keepdims=True)
    o2 = jax.nn.relu(jnp.matmul(inv_norm_adj, jnp.matmul(inputs, w2)))
    return (o1 + o2) / 2.0


if __name__ == "__main__":
    key = jax.random.PRNGKey(0)
    k_x, k_a, k_w1, k_w2 = jax.random.split(key, 4)

    B, N, F_in, F_out = 2, 8, 32, 32
    inputs = jax.random.normal(k_x, (B, N, F_in), dtype=jnp.float32)
    # strictly positive adjacency -> nonzero row/col sums (avoids div-by-zero;
    # degenerate all-zero rows propagate inf/nan slightly differently than torch).
    adj = jax.random.uniform(k_a, (B, N, N), dtype=jnp.float32,
                             minval=0.1, maxval=1.0)

    weight1 = xavier_uniform(k_w1, F_in, F_out)
    weight2 = xavier_uniform(k_w2, F_in, F_out)

    out = directed_graph_convolution(inputs, adj, weight1, weight2)
    out = jax.block_until_ready(out)

    ref = reference(inputs, adj, weight1, weight2)
    assert out.shape == (B, N, F_out)
    assert jnp.allclose(out, ref, atol=2e-5, rtol=2e-5), "mismatch vs reference"

    print("KERNEL_OK")
</pallas_src>

<mosaic_0001>
module attributes {stable_mosaic.version = 11 : i64} {
  func.func @_dgc_kernel(%arg0: i32, %arg1: memref<1x8x32xf32, #tpu.memory_space<vmem>>, %arg2: memref<1x8x8xf32, #tpu.memory_space<vmem>>, %arg3: memref<32x64xf32, #tpu.memory_space<vmem>>, %arg4: memref<1x8x32xf32, #tpu.memory_space<vmem>>) attributes {dimension_semantics = [#tpu.dimension_semantics<parallel>], iteration_bounds = array<i64: 2>, scalar_prefetch = 0 : i64, scratch_operands = 0 : i64, tpu.core_type = #tpu.core_type<tc>, window_params = [{transform_indices = @transform_0, window_bounds = array<i64: 1, 8, 32>}, {transform_indices = @transform_1, window_bounds = array<i64: 1, 8, 8>}, {pipeline_mode = #tpu.pipeline_mode<synchronous>, transform_indices = @transform_2, window_bounds = array<i64: 32, 64>}, {transform_indices = @transform_3, window_bounds = array<i64: 1, 8, 32>}]} {
    %c0 = arith.constant 0 : index
    %c0_0 = arith.constant 0 : index
    %c0_1 = arith.constant 0 : index
    %0 = vector.load %arg1[%c0, %c0_0, %c0_1] : memref<1x8x32xf32, #tpu.memory_space<vmem>>, vector<1x8x32xf32>
    %c0_2 = arith.constant 0 : index
    %c0_3 = arith.constant 0 : index
    %c0_4 = arith.constant 0 : index
    %1 = vector.load %arg2[%c0_2, %c0_3, %c0_4] : memref<1x8x8xf32, #tpu.memory_space<vmem>>, vector<1x8x8xf32>
    %c0_5 = arith.constant 0 : index
    %c0_6 = arith.constant 0 : index
    %2 = vector.load %arg3[%c0_5, %c0_6] : memref<32x64xf32, #tpu.memory_space<vmem>>, vector<32x64xf32>
    %3 = vector.shape_cast %0 : vector<1x8x32xf32> to vector<8x32xf32>
    %cst = arith.constant dense<0.000000e+00> : vector<8x64xf32>
    %4 = tpu.matmul %3, %2, %cst {dimension_numbers = #tpu.dot_dimension_numbers<[1], [0], [0], [1], [0, 0, 1, 1], [], []>} : vector<8x32xf32>, vector<32x64xf32>, vector<8x64xf32> -> vector<8x64xf32>
    %5 = vector.shape_cast %4 : vector<8x64xf32> to vector<1x8x64xf32>
    %6 = vector.extract_strided_slice %5 {offsets = [0, 0, 0], sizes = [1, 8, 32], strides = [1, 1, 1]} : vector<1x8x64xf32> to vector<1x8x32xf32>
    %7 = vector.extract_strided_slice %5 {offsets = [0, 0, 32], sizes = [1, 8, 32], strides = [1, 1, 1]} : vector<1x8x64xf32> to vector<1x8x32xf32>
    "tpu.trace_start"() <{level = 10 : i32, message = "bij,bjk->bik"}> : () -> ()
    %cst_7 = arith.constant dense<0.000000e+00> : vector<1x8x32xf32>
    %8 = tpu.matmul %1, %6, %cst_7 {dimension_numbers = #tpu.dot_dimension_numbers<[2], [1], [1], [2], [0, 0, 0, 1, 1, 2], [0], [0]>} : vector<1x8x8xf32>, vector<1x8x32xf32>, vector<1x8x32xf32> -> vector<1x8x32xf32>
    "tpu.trace_stop"() : () -> ()
    %cst_8 = arith.constant dense<0.000000e+00> : vector<1x8xf32>
    %9 = vector.multi_reduction <add>, %1, %cst_8 [2] : vector<1x8x8xf32> to vector<1x8xf32>
    %10 = vector.shape_cast %9 : vector<1x8xf32> to vector<1x8x1xf32>
    %cst_9 = arith.constant 1.000000e+00 : f32
    %11 = vector.broadcast %cst_9 : f32 to vector<1x8x1xf32>
    %12 = arith.divf %11, %10 : vector<1x8x1xf32>
    %13 = vector.broadcast %12 : vector<1x8x1xf32> to vector<1x8x32xf32>
    %14 = arith.mulf %8, %13 : vector<1x8x32xf32>
    %cst_10 = arith.constant 0.000000e+00 : f32
    %15 = vector.broadcast %cst_10 : f32 to vector<1x8x32xf32>
    %16 = arith.maximumf %14, %15 : vector<1x8x32xf32>
    %cst_11 = arith.constant dense<0.000000e+00> : vector<1x8xf32>
    %17 = vector.multi_reduction <add>, %1, %cst_11 [1] : vector<1x8x8xf32> to vector<1x8xf32>
    %18 = vector.shape_cast %17 : vector<1x8xf32> to vector<1x1x8xf32>
    %cst_12 = arith.constant 1.000000e+00 : f32
    %19 = vector.broadcast %cst_12 : f32 to vector<1x1x8xf32>
    %20 = arith.divf %19, %18 : vector<1x1x8xf32>
    %21 = vector.broadcast %20 : vector<1x1x8xf32> to vector<1x8x8xf32>
    %22 = arith.mulf %1, %21 : vector<1x8x8xf32>
    "tpu.trace_start"() <{level = 10 : i32, message = "bji,bjk->bik"}> : () -> ()
    %cst_13 = arith.constant dense<0.000000e+00> : vector<1x8x32xf32>
    %23 = tpu.matmul %22, %7, %cst_13 {dimension_numbers = #tpu.dot_dimension_numbers<[1], [1], [2], [2], [0, 0, 0, 2, 1, 2], [0], [0]>} : vector<1x8x8xf32>, vector<1x8x32xf32>, vector<1x8x32xf32> -> vector<1x8x32xf32>
    "tpu.trace_stop"() : () -> ()
    %cst_14 = arith.constant 0.000000e+00 : f32
    %24 = vector.broadcast %cst_14 : f32 to vector<1x8x32xf32>
    %25 = arith.maximumf %23, %24 : vector<1x8x32xf32>
    %26 = arith.addf %16, %25 : vector<1x8x32xf32>
    %cst_15 = arith.constant 5.000000e-01 : f32
    %27 = vector.broadcast %cst_15 : f32 to vector<1x8x32xf32>
    %28 = arith.mulf %26, %27 : vector<1x8x32xf32>
    %c0_16 = arith.constant 0 : index
    %c0_17 = arith.constant 0 : index
    %c0_18 = arith.constant 0 : index
    %29 = vector.load %arg4[%c0_16, %c0_17, %c0_18] : memref<1x8x32xf32, #tpu.memory_space<vmem>>, vector<1x8x32xf32>
    tpu.vector_store %arg4[%c0_16, %c0_17, %c0_18], %28 {strides = array<i32>} : memref<1x8x32xf32, #tpu.memory_space<vmem>>, vector<1x8x32xf32>,
    return
  }
  func.func @transform_0(%arg0: i32) -> (i32, i32, i32) {
    %c0_i32 = arith.constant 0 : i32
    %c0_i32_0 = arith.constant 0 : i32
    %c0_i32_1 = arith.constant 0 : i32
    return %arg0, %c0_i32, %c0_i32_0 : i32, i32, i32
  }
  func.func @transform_1(%arg0: i32) -> (i32, i32, i32) {
    %c0_i32 = arith.constant 0 : i32
    %c0_i32_0 = arith.constant 0 : i32
    %c0_i32_1 = arith.constant 0 : i32
    return %arg0, %c0_i32, %c0_i32_0 : i32, i32, i32
  }
  func.func @transform_2(%arg0: i32) -> (i32, i32) {
    %c0_i32 = arith.constant 0 : i32
    %c0_i32_0 = arith.constant 0 : i32
    %c0_i32_1 = arith.constant 0 : i32
    return %c0_i32, %c0_i32_0 : i32, i32
  }
  func.func @transform_3(%arg0: i32) -> (i32, i32, i32) {
    %c0_i32 = arith.constant 0 : i32
    %c0_i32_0 = arith.constant 0 : i32
    %c0_i32_1 = arith.constant 0 : i32
    return %arg0, %c0_i32, %c0_i32_0 : i32, i32, i32
  }
}

</mosaic_0001>

<llo_original>
// kernel: tpu_custom_call.1
$region0: #{tpu_custom_call.1}
  #allocation0 [shape = 'u32[]', space=smem, size = 0x4, offset = 0x4, fixed_abs, tag = 'smem constant byte address 0x4 - core index']
  #allocation1 [shape = 'u32[144,128]{1,0:T(1,128)}', space=vmem, size = 0x12000, scoped, tag = 'internal scratch']
  %s0 = inlined_call_operand.hbm [shape: f32[2,8,32], index: 0, kind: input, shape index: {}]
  %s1 = inlined_call_operand.hbm [shape: f32[2,8,8], index: 1, kind: input, shape index: {}]
  %s2 = inlined_call_operand.hbm [shape: f32[32,64], index: 2, kind: input, shape index: {}]
  %s3 = inlined_call_operand.hbm [shape: f32[2,8,32], index: 3, kind: output, shape index: {}]
  %s4 = sld [smem:[#allocation0]]
  $region57: #{tpu_custom_call.1} parent=0
    _
  %s6 = ssub.s32 1, %s4
  %s7 = scalar_select 0, %s6, %s4
  $region1: #{tpu_custom_call.1} parent=0
    #allocation2 [shape = 'u8[8192]{0}', space=vmem, size = 0x2000, scoped, tag = 'input window, operand 0']
    #allocation3 [shape = 's32[2]{0}', space=sflag, size = 0x8, scoped, tag = 'scoped memory for tpu_custom_call.1']
    #allocation4 [shape = 's32[2]{0}', space=sflag, size = 0x8, scoped, tag = 'scoped memory for tpu_custom_call.1']
    #allocation5 [shape = 'u8[8192]{0}', space=vmem, size = 0x2000, scoped, tag = 'input window, operand 1']
    #allocation6 [shape = 's32[2]{0}', space=sflag, size = 0x8, scoped, tag = 'scoped memory for tpu_custom_call.1']
    #allocation7 [shape = 'u8[16384]{0}', space=vmem, size = 0x4000, scoped, tag = 'input window, operand 2, single buffered']
    #allocation8 [shape = 'u8[8192]{0}', space=vmem, size = 0x2000, scoped, tag = 'output window, operand 0']
    %8 = vsyncpa [#allocation3], 0
    %s9 = scalar_lea.sflag [#allocation3], 1
    %10 = vsyncpa %s9, 0
    %11 = vsyncpa [#allocation6], 0
    %s12 = scalar_lea.sflag [#allocation6], 1
    %13 = vsyncpa %s12, 0
    %14 = vsyncpa [#allocation4], 0
    %s15 = scalar_lea.sflag [#allocation4], 1
    %16 = vsyncpa %s15, 0
    loop: start=0, step=1, limit=4
    $region2: #{tpu_custom_call.1} parent=1 // loop_pre_header
      _
    $region3: #{tpu_custom_call.1} parent=1 // loop_header
      %s18 = sphi 0, %s22
      %p19 = scmp.ge.s32.totalorder %s18, 4
      %s28 = sphi 0, %s30
      %s31 = sphi 0, %s28
      %s32 = sphi 0, %s31
      %s48 = sphi 0, %s32
      %s54 = sphi 0, %s56
      %s57 = sphi 0, %s54
      %s58 = sphi 0, %s57
      %s74 = sphi 0, %s58
      %s78 = sphi 0, %s78
      %s80 = sphi 0, %s78
      %s81 = sphi 0, %s80
      %s95 = sphi 0, %s81
      %s101 = sphi 0, %s103
      %s104 = sphi 0, %s101
      %s105 = sphi 0, %s104
      %s121 = sphi 0, %s105
    $region4: #{tpu_custom_call.1} parent=1 // loop_header_branch
      %21 = sbr.rel (%p19) target = $region8
    $region5: #{tpu_custom_call.1} parent=1 // loop_body
      %s23 = ssub.s32 %s18, 1
      %s24 = ssub.s32 %s18, 2
      %s25 = sadd.s32 %s18, 1
      %s26 = ssub.s32 %s18, %s25
      %p27 = scmp.eq.s32.totalorder %s26, 0
      %s29 = sadd.s32 %s28, 1
      %s30 = scalar_select %p27, %s28, %s29
      %p33 = pneg %p27
      %p34 = scmp.eq.s32.totalorder %s18, 1
      %p35 = por %p33, %p34
      %p36 = scmp.ne.s32.totalorder %s28, %s31
      %p37 = scmp.eq.s32.totalorder %s18, 0
      %p38 = por %p36, %p37
      %p39 = scmp.ne.s32.totalorder %s28, %s31
      %p40 = scmp.eq.s32.totalorder %s23, 1
      %p41 = por %p39, %p40
      %p42 = scmp.ne.s32.totalorder %s31, %s32
      %p43 = scmp.eq.s32.totalorder %s23, 0
      %p44 = por %p42, %p43
      %p45 = scmp.ne.s32.totalorder %s31, %s32
      %p46 = scmp.eq.s32.totalorder %s24, 1
      %p47 = por %p45, %p46
      %p49 = scmp.ne.s32.totalorder %s32, %s48
      %p50 = scmp.eq.s32.totalorder %s24, 0
      %p51 = por %p49, %p50
      %s52 = ssub.s32 %s18, %s25
      %p53 = scmp.eq.s32.totalorder %s52, 0
      %s55 = sadd.s32 %s54, 1
      %s56 = scalar_select %p53, %s54, %s55
      %p59 = pneg %p53
      %p60 = scmp.eq.s32.totalorder %s18, 1
      %p61 = por %p59, %p60
      %p62 = scmp.ne.s32.totalorder %s54, %s57
      %p63 = scmp.eq.s32.totalorder %s18, 0
      %p64 = por %p62, %p63
      %p65 = scmp.ne.s32.totalorder %s54, %s57
      %p66 = scmp.eq.s32.totalorder %s23, 1
      %p67 = por %p65, %p66
      %p68 = scmp.ne.s32.totalorder %s57, %s58
      %p69 = scmp.eq.s32.totalorder %s23, 0
      %p70 = por %p68, %p69
      %p71 = scmp.ne.s32.totalorder %s57, %s58
      %p72 = scmp.eq.s32.totalorder %s24, 1
      %p73 = por %p71, %p72
      %p75 = scmp.ne.s32.totalorder %s58, %s74
      %p76 = scmp.eq.s32.totalorder %s24, 0
      %p77 = por %p75, %p76
      %s79 = sadd.s32 %s78, 1
      %p82 = scmp.eq.s32.totalorder %s18, 1
      %p83 = scmp.ne.s32.totalorder %s78, %s80
      %p84 = scmp.eq.s32.totalorder %s18, 0
      %p85 = por %p83, %p84
      %p86 = scmp.ne.s32.totalorder %s78, %s80
      %p87 = scmp.eq.s32.totalorder %s23, 1
      %p88 = por %p86, %p87
      %p89 = scmp.ne.s32.totalorder %s80, %s81
      %p90 = scmp.eq.s32.totalorder %s23, 0
      %p91 = por %p89, %p90
      %p92 = scmp.ne.s32.totalorder %s80, %s81
      %p93 = scmp.eq.s32.totalorder %s24, 1
      %p94 = por %p92, %p93
      %p96 = scmp.ne.s32.totalorder %s81, %s95
      %p97 = scmp.eq.s32.totalorder %s24, 0
      %p98 = por %p96, %p97
      %s99 = ssub.s32 %s18, %s25
      %p100 = scmp.eq.s32.totalorder %s99, 0
      %s102 = sadd.s32 %s101, 1
      %s103 = scalar_select %p100, %s101, %s102
      %p106 = pneg %p100
      %p107 = scmp.eq.s32.totalorder %s18, 1
      %p108 = por %p106, %p107
      %p109 = scmp.ne.s32.totalorder %s101, %s104
      %p110 = scmp.eq.s32.totalorder %s18, 0
      %p111 = por %p109, %p110
      %p112 = scmp.ne.s32.totalorder %s101, %s104
      %p113 = scmp.eq.s32.totalorder %s23, 1
      %p114 = por %p112, %p113
      %p115 = scmp.ne.s32.totalorder %s104, %s105
      %p116 = scmp.eq.s32.totalorder %s23, 0
      %p117 = por %p115, %p116
      %p118 = scmp.ne.s32.totalorder %s104, %s105
      %p119 = scmp.eq.s32.totalorder %s24, 1
      %p120 = por %p118, %p119
      %p122 = scmp.ne.s32.totalorder %s105, %s121
      %p123 = scmp.eq.s32.totalorder %s24, 0
      %p124 = por %p122, %p123
      %p125 = scmp.le.s32.totalorder 1, %s18
      %p126 = scmp.lt.s32.totalorder %s18, 3
      %p127 = pnand %p125, %p126
      %p128 = pneg %p127
      // Predicated region
      $region9: #{tpu_custom_call.1} parent=5 // pred_check
        _
      $region10: #{tpu_custom_call.1} parent=5 // pred_check_branch
        %130 = sbr.rel (%p127) target = $region12
      $region11: #{tpu_custom_call.1} parent=5 // pred_region
        %s131 = ssub.s32 %s18, 1
        // Predicated region
        $region13: #{tpu_custom_call.1} parent=11 // pred_check
          %p132 = pneg %p91
        $region14: #{tpu_custom_call.1} parent=11 // pred_check_branch
          %134 = sbr.rel (%p132) target = $region16
        $region15: #{tpu_custom_call.1} parent=11 // pred_region
          %s136 = ssub.s32 512, 512
          %137 = vsyncadd [#allocation6], %s136
          %s138 = sshll.u32 [#allocation7], 4
          %s139 = int_to_ptr.vmem [resolvable:$true] %s138
          %144 = dma.hbm_to_vmem [thread:$0]  %s2, 512, %s139, [#allocation6], 128, 128, 8
        $region16: #{tpu_custom_call.1} parent=11 // pred_fallthru
          _
      $region12: #{tpu_custom_call.1} parent=5 // pred_fallthru
        _
      %p145 = scmp.lt.s32.totalorder %s18, 2
      // Predicated region
      $region17: #{tpu_custom_call.1} parent=5 // pred_check
        %p146 = pneg %p145
      $region18: #{tpu_custom_call.1} parent=5 // pred_check_branch
        %148 = sbr.rel (%p146) target = $region20
      $region19: #{tpu_custom_call.1} parent=5 // pred_region
        // Predicated region
        $region21: #{tpu_custom_call.1} parent=19 // pred_check
          %p149 = pneg %p38
        $region22: #{tpu_custom_call.1} parent=19 // pred_check_branch
          %151 = sbr.rel (%p149) target = $region24
        $region23: #{tpu_custom_call.1} parent=19 // pred_region
          %s152 = sand.u32 %s28, 1
          %s153 = scalar_lea.sflag [#allocation3], %s152
          %s154 = sand.u32 %s28, 1
          %s155 = smul.addr %s154, 8
          %s156 = scalar_lea.vmem [#allocation2], %s155
          %s158 = ssub.s32 128, 128
          %159 = vsyncadd %s153, %s158
          %s160 = smul.addr %s18, 128
          %s161 = scalar_lea.hbm %s0, %s160
          %s163 = sshll.u32 %s156, 4
          %s164 = int_to_ptr.vmem [resolvable:$true] %s163
          %166 = dma.hbm_to_vmem [thread:$0]  %s161, 128, %s164, %s153
        $region24: #{tpu_custom_call.1} parent=19 // pred_fallthru
          _
        // Predicated region
        $region25: #{tpu_custom_call.1} parent=19 // pred_check
          %p167 = pneg %p64
        $region26: #{tpu_custom_call.1} parent=19 // pred_check_branch
          %169 = sbr.rel (%p167) target = $region28
        $region27: #{tpu_custom_call.1} parent=19 // pred_region
          %s170 = sand.u32 %s18, 1
          %s171 = scalar_lea.sflag [#allocation6], %s170
          %s172 = sand.u32 %s54, 1
          %s173 = smul.addr %s172, 8
          %s174 = scalar_lea.vmem [#allocation5], %s173
          %s176 = ssub.s32 128, 128
          %177 = vsyncadd %s171, %s176
          %s178 = smul.addr %s18, 128
          %s179 = scalar_lea.hbm %s1, %s178
          %s181 = sshll.u32 %s174, 4
          %s182 = int_to_ptr.vmem [resolvable:$true] %s181
          %184 = dma.hbm_to_vmem [thread:$0]  %s179, 128, %s182, %s171
        $region28: #{tpu_custom_call.1} parent=19 // pred_fallthru
          _
      $region20: #{tpu_custom_call.1} parent=5 // pred_fallthru
        _
      %p185 = scmp.le.s32.totalorder 1, %s18
      %p186 = scmp.lt.s32.totalorder %s18, 3
      %p187 = pnand %p185, %p186
      %p188 = pneg %p187
      // Predicated region
      $region29: #{tpu_custom_call.1} parent=5 // pred_check
        _
      $region30: #{tpu_custom_call.1} parent=5 // pred_check_branch
        %190 = sbr.rel (%p187) target = $region32
      $region31: #{tpu_custom_call.1} parent=5 // pred_region
        %s191 = ssub.s32 %s18, 1
        %s192 = sand.u32 %s31, 1
        %s193 = scalar_lea.sflag [#allocation3], %s192
        %s194 = sand.u32 %s31, 1
        %s195 = smul.addr %s194, 8
        %s196 = scalar_lea.vmem [#allocation2], %s195
        // Predicated region
        $region33: #{tpu_custom_call.1} parent=31 // pred_check
          %p197 = pneg %p44
        $region34: #{tpu_custom_call.1} parent=31 // pred_check_branch
          %199 = sbr.rel (%p197) target = $region36
        $region35: #{tpu_custom_call.1} parent=31 // pred_region
          %200 = dma.done %s193, 128
        $region36: #{tpu_custom_call.1} parent=31 // pred_fallthru
          _
        %s201 = sand.u32 %s23, 1
        %s202 = scalar_lea.sflag [#allocation6], %s201
        %s203 = sand.u32 %s57, 1
        %s204 = smul.addr %s203, 8
        %s205 = scalar_lea.vmem [#allocation5], %s204
        // Predicated region
        $region37: #{tpu_custom_call.1} parent=31 // pred_check
          %p206 = pneg %p70
        $region38: #{tpu_custom_call.1} parent=31 // pred_check_branch
          %208 = sbr.rel (%p206) target = $region40
        $region39: #{tpu_custom_call.1} parent=31 // pred_region
          %209 = dma.done %s202, 128
        $region40: #{tpu_custom_call.1} parent=31 // pred_fallthru
          _
        // Predicated region
        $region41: #{tpu_custom_call.1} parent=31 // pred_check
          %p210 = pneg %p91
        $region42: #{tpu_custom_call.1} parent=31 // pred_check_branch
          %212 = sbr.rel (%p210) target = $region44
        $region43: #{tpu_custom_call.1} parent=31 // pred_region
          %213 = dma.done [#allocation6], 512
        $region44: #{tpu_custom_call.1} parent=31 // pred_fallthru
          _
        %s214 = sand.u32 %s31, 1
        %s215 = scalar_lea.sflag [#allocation3], %s214
        %s216 = sand.u32 %s31, 1
        %s217 = smul.addr %s216, 8
        %s218 = scalar_lea.vmem [#allocation2], %s217
        %p219 = pneg %p44
        %p220 = pneg %p41
        %s221 = sand.u32 %s23, 1
        %s222 = scalar_lea.sflag [#allocation6], %s221
        %s223 = sand.u32 %s57, 1
        %s224 = smul.addr %s223, 8
        %s225 = scalar_lea.vmem [#allocation5], %s224
        %p226 = pneg %p70
        %p227 = pneg %p67
        %p228 = pneg %p91
        %p229 = pneg %p88
        %p230 = pneg %p117
        %p231 = pneg %p114
        %s232 = sand.u32 %s104, 1
        %s233 = scalar_lea.sflag [#allocation4], %s232
        %s234 = sand.u32 %s104, 1
        %s235 = smul.addr %s234, 8
        %s236 = scalar_lea.vmem [#allocation8], %s235
        %v237 = vld [vmem:[%s196] sm:$0xff]
        %v238 = vld [vmem:[%s205] sm:$0xff]
        %v239 = vld [vmem:[#allocation7] sm:$0xff]
        %v240 = vld [vmem:[#allocation7 + $0x8] sm:$0xff]
        %v241 = vld [vmem:[#allocation7 + $0x10] sm:$0xff]
        %v242 = vld [vmem:[#allocation7 + $0x18] sm:$0xff]
        %vm243 = vcmask 261120
        %v245 = vsel %vm243, %v237, 0
        %247 = vmatprep.subr.mxu0 0.0
        %248 = vmatpush1.msra.mxu0 0.0
        %249 = vmatprep.subr.mxu0 0.0
        %250 = vmatpush1.msra.mxu0 0.0
        %251 = vmatprep.subr.mxu0 0.0
        %252 = vmatpush1.msra.mxu0 0.0
        %253 = vmatprep.subr.mxu0 0.0
        %254 = vmatpush1.msra.mxu0 0.0
        %255 = vmatprep.subr.mxu0 0.0
        %256 = vmatpush1.msra.mxu0 0.0
        %257 = vmatprep.subr.mxu0 0.0
        %258 = vmatpush1.msra.mxu0 0.0
        %259 = vmatprep.subr.mxu0 0.0
        %260 = vmatpush1.msra.mxu0 0.0
        %261 = vmatprep.subr.mxu0 0.0
        %262 = vmatpush1.msra.mxu0 0.0
        %263 = vmatprep.subr.mxu0 0.0
        %264 = vmatpush1.msra.mxu0 0.0
        %265 = vmatprep.subr.mxu0 0.0
        %266 = vmatpush1.msra.mxu0 0.0
        %267 = vmatprep.subr.mxu0 0.0
        %268 = vmatpush1.msra.mxu0 0.0
        %269 = vmatprep.subr.mxu0 0.0
        %270 = vmatpush1.msra.mxu0 0.0
        %271 = vmatprep.subr.mxu0 0.0
        %272 = vmatpush1.msra.mxu0 %v242
        %273 = vmatprep.subr.mxu0 0.0
        %274 = vmatpush1.msra.mxu0 %v241
        %275 = vmatprep.subr.mxu0 0.0
        %276 = vmatpush1.msra.mxu0 %v240
        %277 = vmatprep.subr.mxu0 0.0
        %278 = vmatpush1.msra.mxu0 %v239
        %279 = vmatprep.subr.mxu0 0.0
        %280 = vmatpush2.msra.mxu0 0.0
        %281 = vmatprep.subr.mxu0 0.0
        %282 = vmatpush2.msra.mxu0 0.0
        %283 = vmatprep.subr.mxu0 0.0
        %284 = vmatpush2.msra.mxu0 0.0
        %285 = vmatprep.subr.mxu0 0.0
        %286 = vmatpush2.msra.mxu0 0.0
        %287 = vmatprep.subr.mxu0 0.0
        %288 = vmatpush2.msra.mxu0 0.0
        %289 = vmatprep.subr.mxu0 0.0
        %290 = vmatpush2.msra.mxu0 0.0
        %291 = vmatprep.subr.mxu0 0.0
        %292 = vmatpush2.msra.mxu0 0.0
        %293 = vmatprep.subr.mxu0 0.0
        %294 = vmatpush2.msra.mxu0 0.0
        %295 = vmatprep.subr.mxu0 0.0
        %296 = vmatpush2.msra.mxu0 0.0
        %297 = vmatprep.subr.mxu0 0.0
        %298 = vmatpush2.msra.mxu0 0.0
        %299 = vmatprep.subr.mxu0 0.0
        %300 = vmatpush2.msra.mxu0 0.0
        %301 = vmatprep.subr.mxu0 0.0
        %302 = vmatpush2.msra.mxu0 0.0
        %303 = vmatprep.subr.mxu0 0.0
        %304 = vmatpush2.msra.mxu0 0.0
        %305 = vmatprep.subr.mxu0 0.0
        %306 = vmatpush2.msra.mxu0 0.0
        %307 = vmatprep.subr.mxu0 0.0
        %308 = vmatpush2.msra.mxu0 0.0
        %309 = vmatprep.subr.mxu0 0.0
        %310 = vmatpush2.msra.mxu0 0.0
        %311 = vmatprep.mubr.f32.mxu0 0.0
        %312 = vmatmul.mubr.f32.gmra.mxu0 %v245
        %v313 = vpop.f32.mrf.mxu0
        %v314 = vadd.f32 0.0, %v313
        %v315 = vpop.f32.mrf.mxu0
        %316 = vdwg.mxu0
        %vm317 = vcmask 64512
        %v319 = vsel %vm317, %v238, 0
        %321 = vmatprep.subr.mxu0 0.0
        %322 = vmatpush1.msra.mxu0 0.0
        %323 = vmatprep.subr.mxu0 0.0
        %324 = vmatpush1.msra.mxu0 0.0
        %325 = vmatprep.subr.mxu0 0.0
        %326 = vmatpush1.msra.mxu0 0.0
        %327 = vmatprep.subr.mxu0 0.0
        %328 = vmatpush1.msra.mxu0 0.0
        %329 = vmatprep.subr.mxu0 0.0
        %330 = vmatpush1.msra.mxu0 0.0
        %331 = vmatprep.subr.mxu0 0.0
        %332 = vmatpush1.msra.mxu0 0.0
        %333 = vmatprep.subr.mxu0 0.0
        %334 = vmatpush1.msra.mxu0 0.0
        %335 = vmatprep.subr.mxu0 0.0
        %336 = vmatpush1.msra.mxu0 0.0
        %337 = vmatprep.subr.mxu0 0.0
        %338 = vmatpush1.msra.mxu0 0.0
        %339 = vmatprep.subr.mxu0 0.0
        %340 = vmatpush1.msra.mxu0 0.0
        %341 = vmatprep.subr.mxu0 0.0
        %342 = vmatpush1.msra.mxu0 0.0
        %343 = vmatprep.subr.mxu0 0.0
        %344 = vmatpush1.msra.mxu0 0.0
        %345 = vmatprep.subr.mxu0 0.0
        %346 = vmatpush1.msra.mxu0 0.0
        %347 = vmatprep.subr.mxu0 0.0
        %348 = vmatpush1.msra.mxu0 0.0
        %349 = vmatprep.subr.mxu0 0.0
        %350 = vmatpush1.msra.mxu0 0.0
        %351 = vmatprep.subr.mxu0 0.0
        %352 = vmatpush1.msra.mxu0 %v314
        %353 = vmatprep.subr.mxu0 0.0
        %354 = vmatpush2.msra.mxu0 0.0
        %355 = vmatprep.subr.mxu0 0.0
        %356 = vmatpush2.msra.mxu0 0.0
        %357 = vmatprep.subr.mxu0 0.0
        %358 = vmatpush2.msra.mxu0 0.0
        %359 = vmatprep.subr.mxu0 0.0
        %360 = vmatpush2.msra.mxu0 0.0
        %361 = vmatprep.subr.mxu0 0.0
        %362 = vmatpush2.msra.mxu0 0.0
        %363 = vmatprep.subr.mxu0 0.0
        %364 = vmatpush2.msra.mxu0 0.0
        %365 = vmatprep.subr.mxu0 0.0
        %366 = vmatpush2.msra.mxu0 0.0
        %367 = vmatprep.subr.mxu0 0.0
        %368 = vmatpush2.msra.mxu0 0.0
        %369 = vmatprep.subr.mxu0 0.0
        %370 = vmatpush2.msra.mxu0 0.0
        %371 = vmatprep.subr.mxu0 0.0
        %372 = vmatpush2.msra.mxu0 0.0
        %373 = vmatprep.subr.mxu0 0.0
        %374 = vmatpush2.msra.mxu0 0.0
        %375 = vmatprep.subr.mxu0 0.0
        %376 = vmatpush2.msra.mxu0 0.0
        %377 = vmatprep.subr.mxu0 0.0
        %378 = vmatpush2.msra.mxu0 0.0
        %379 = vmatprep.subr.mxu0 0.0
        %380 = vmatpush2.msra.mxu0 0.0
        %381 = vmatprep.subr.mxu0 0.0
        %382 = vmatpush2.msra.mxu0 0.0
        %383 = vmatprep.subr.mxu0 0.0
        %384 = vmatpush2.msra.mxu0 0.0
        %385 = vmatprep.mubr.f32.mxu0 0.0
        %386 = vmatmul.mubr.f32.gmra.mxu0 %v319
        %v387 = vpop.f32.mrf.mxu0
        %v388 = vadd.f32 0.0, %v387
        %v389 = vpop.f32.mrf.mxu0
        %390 = vdwg.mxu0
        %v391 = vsel %vm317, %v238, 0.0
        %392 = vadd.xlane.f32.xlu0 %v391
        %v393 = vpop.xlane.xlu0 %392
        %v394 = vrcp.pop %v393
        %v395 = vmul.f32 1.0, %v394
        %v396 = vmul.f32 %v388, %v395
        %v397 = vmax.f32 %v396, 0.0
        %v398 = vrot.slane %v391, 4
        %v399 = vadd.f32 %v391, %v398
        %v400 = vrot.slane %v399, 2
        %v401 = vadd.f32 %v399, %v400
        %v402 = vrot.slane %v401, 1
        %v403 = vadd.f32 %v401, %v402
        %v404 = vrcp.pop %v403
        %v405 = vmul.f32 1.0, %v404
        %v406 = vmul.f32 %v238, %v405
        %407 = vxpose.xlu0.b32.start [1/16] %v406, 128
        %408 = vxpose.xlu0.b32.cont [2/16] 0.0, 128
        %409 = vxpose.xlu0.b32.cont [3/16] 0.0, 128
        %410 = vxpose.xlu0.b32.cont [4/16] 0.0, 128
        %411 = vxpose.xlu0.b32.cont [5/16] 0.0, 128
        %412 = vxpose.xlu0.b32.cont [6/16] 0.0, 128
        %413 = vxpose.xlu0.b32.cont [7/16] 0.0, 128
        %414 = vxpose.xlu0.b32.cont [8/16] 0.0, 128
        %415 = vxpose.xlu0.b32.cont [9/16] 0.0, 128
        %416 = vxpose.xlu0.b32.cont [10/16] 0.0, 128
        %417 = vxpose.xlu0.b32.cont [11/16] 0.0, 128
        %418 = vxpose.xlu0.b32.cont [12/16] 0.0, 128
        %419 = vxpose.xlu0.b32.cont [13/16] 0.0, 128
        %420 = vxpose.xlu0.b32.cont [14/16] 0.0, 128
        %421 = vxpose.xlu0.b32.cont [15/16] 0.0, 128
        %422 = vxpose.xlu0.b32.end [16/16] 0.0, 128
        %v423 = vpop.trf.xlu0
        %v424 = vpop.trf.xlu0
        %v425 = vpop.trf.xlu0
        %v426 = vpop.trf.xlu0
        %v427 = vpop.trf.xlu0
        %v428 = vpop.trf.xlu0
        %v429 = vpop.trf.xlu0
        %v430 = vpop.trf.xlu0
        %v431 = vpop.trf.xlu0
        %v432 = vpop.trf.xlu0
        %v433 = vpop.trf.xlu0
        %v434 = vpop.trf.xlu0
        %v435 = vpop.trf.xlu0
        %v436 = vpop.trf.xlu0
        %v437 = vpop.trf.xlu0
        %v438 = vpop.trf.xlu0
        %440 = vrot.lane.b32.xlu0 %v314, 96
        %v441 = vpop.permute.xlu0 %440
        %v444 = vsel %vm317, %v423, 0
        %446 = vmatprep.subr.mxu0 0.0
        %447 = vmatpush1.msra.mxu0 0.0
        %448 = vmatprep.subr.mxu0 0.0
        %449 = vmatpush1.msra.mxu0 0.0
        %450 = vmatprep.subr.mxu0 0.0
        %451 = vmatpush1.msra.mxu0 0.0
        %452 = vmatprep.subr.mxu0 0.0
        %453 = vmatpush1.msra.mxu0 0.0
        %454 = vmatprep.subr.mxu0 0.0
        %455 = vmatpush1.msra.mxu0 0.0
        %456 = vmatprep.subr.mxu0 0.0
        %457 = vmatpush1.msra.mxu0 0.0
        %458 = vmatprep.subr.mxu0 0.0
        %459 = vmatpush1.msra.mxu0 0.0
        %460 = vmatprep.subr.mxu0 0.0
        %461 = vmatpush1.msra.mxu0 0.0
        %462 = vmatprep.subr.mxu0 0.0
        %463 = vmatpush1.msra.mxu0 0.0
        %464 = vmatprep.subr.mxu0 0.0
        %465 = vmatpush1.msra.mxu0 0.0
        %466 = vmatprep.subr.mxu0 0.0
        %467 = vmatpush1.msra.mxu0 0.0
        %468 = vmatprep.subr.mxu0 0.0
        %469 = vmatpush1.msra.mxu0 0.0
        %470 = vmatprep.subr.mxu0 0.0
        %471 = vmatpush1.msra.mxu0 0.0
        %472 = vmatprep.subr.mxu0 0.0
        %473 = vmatpush1.msra.mxu0 0.0
        %474 = vmatprep.subr.mxu0 0.0
        %475 = vmatpush1.msra.mxu0 0.0
        %476 = vmatprep.subr.mxu0 0.0
        %477 = vmatpush1.msra.mxu0 %v441
        %478 = vmatprep.subr.mxu0 0.0
        %479 = vmatpush2.msra.mxu0 0.0
        %480 = vmatprep.subr.mxu0 0.0
        %481 = vmatpush2.msra.mxu0 0.0
        %482 = vmatprep.subr.mxu0 0.0
        %483 = vmatpush2.msra.mxu0 0.0
        %484 = vmatprep.subr.mxu0 0.0
        %485 = vmatpush2.msra.mxu0 0.0
        %486 = vmatprep.subr.mxu0 0.0
        %487 = vmatpush2.msra.mxu0 0.0
        %488 = vmatprep.subr.mxu0 0.0
        %489 = vmatpush2.msra.mxu0 0.0
        %490 = vmatprep.subr.mxu0 0.0
        %491 = vmatpush2.msra.mxu0 0.0
        %492 = vmatprep.subr.mxu0 0.0
        %493 = vmatpush2.msra.mxu0 0.0
        %494 = vmatprep.subr.mxu0 0.0
        %495 = vmatpush2.msra.mxu0 0.0
        %496 = vmatprep.subr.mxu0 0.0
        %497 = vmatpush2.msra.mxu0 0.0
        %498 = vmatprep.subr.mxu0 0.0
        %499 = vmatpush2.msra.mxu0 0.0
        %500 = vmatprep.subr.mxu0 0.0
        %501 = vmatpush2.msra.mxu0 0.0
        %502 = vmatprep.subr.mxu0 0.0
        %503 = vmatpush2.msra.mxu0 0.0
        %504 = vmatprep.subr.mxu0 0.0
        %505 = vmatpush2.msra.mxu0 0.0
        %506 = vmatprep.subr.mxu0 0.0
        %507 = vmatpush2.msra.mxu0 0.0
        %508 = vmatprep.subr.mxu0 0.0
        %509 = vmatpush2.msra.mxu0 0.0
        %510 = vmatprep.mubr.f32.mxu0 0.0
        %511 = vmatmul.mubr.f32.gmra.mxu0 %v444
        %v512 = vpop.f32.mrf.mxu0
        %v513 = vadd.f32 0.0, %v512
        %v514 = vpop.f32.mrf.mxu0
        %515 = vdwg.mxu0
        %v516 = vmax.f32 %v513, 0.0
        %v517 = vadd.f32 %v397, %v516
        %v518 = vmul.f32 %v517, 0.5
        %519 = vst.msk [vmem:[%s236] sm:$0xff] %vm243, %v518
        %s520 = sand.u32 %s104, 1
        %s521 = scalar_lea.sflag [#allocation4], %s520
        %s522 = sand.u32 %s104, 1
        %s523 = smul.addr %s522, 8
        %s524 = scalar_lea.vmem [#allocation8], %s523
        // Predicated region
        $region45: #{tpu_custom_call.1} parent=31 // pred_check
          %p525 = pneg %p114
        $region46: #{tpu_custom_call.1} parent=31 // pred_check_branch
          %527 = sbr.rel (%p525) target = $region48
        $region47: #{tpu_custom_call.1} parent=31 // pred_region
          %s529 = ssub.s32 128, 128
          %530 = vsyncadd %s521, %s529
          %s531 = smul.addr %s23, 128
          %s532 = scalar_lea.hbm %s3, %s531
          %s534 = sshll.u32 %s524, 4
          %s535 = int_to_ptr.vmem [resolvable:$true] %s534
          %537 = dma.vmem_to_hbm [thread:$0]  %s535, 128, %s532, %s521
        $region48: #{tpu_custom_call.1} parent=31 // pred_fallthru
          _
      $region32: #{tpu_custom_call.1} parent=5 // pred_fallthru
        _
      %p538 = scmp.le.s32.totalorder 2, %s18
      // Predicated region
      $region49: #{tpu_custom_call.1} parent=5 // pred_check
        %p539 = pneg %p538
      $region50: #{tpu_custom_call.1} parent=5 // pred_check_branch
        %541 = sbr.rel (%p539) target = $region52
      $region51: #{tpu_custom_call.1} parent=5 // pred_region
        %s542 = ssub.s32 %s18, 2
        // Predicated region
        $region53: #{tpu_custom_call.1} parent=51 // pred_check
          %p543 = pneg %p120
        $region54: #{tpu_custom_call.1} parent=51 // pred_check_branch
          %545 = sbr.rel (%p543) target = $region56
        $region55: #{tpu_custom_call.1} parent=51 // pred_region
          %s546 = sand.u32 %s105, 1
          %s547 = scalar_lea.sflag [#allocation4], %s546
          %s548 = sand.u32 %s105, 1
          %s549 = smul.addr %s548, 8
          %s550 = scalar_lea.vmem [#allocation8], %s549
          %551 = dma.done %s547, 128
        $region56: #{tpu_custom_call.1} parent=51 // pred_fallthru
          _
      $region52: #{tpu_custom_call.1} parent=5 // pred_fallthru
        _
    $region6: #{tpu_custom_call.1} parent=1 // loop_footer
      %s22 = sadd.s32 1, %s18
    $region7: #{tpu_custom_call.1} parent=1 // loop_footer_branch
      %17 = sbr.rel target = $region3
    $region8: #{tpu_custom_call.1} parent=1 // loop_exit
      _
    %552 = vsyncpa [#allocation3], 1
    %s553 = scalar_lea.sflag [#allocation3], 1
    %554 = vsyncpa %s553, 1
    %555 = vsyncpa [#allocation6], 1
    %s556 = scalar_lea.sflag [#allocation6], 1
    %557 = vsyncpa %s556, 1
    %558 = vsyncpa [#allocation4], 1
    %s559 = scalar_lea.sflag [#allocation4], 1
    %560 = vsyncpa %s559, 1

</llo_original>
